<compile_context>
chip_gen: v5e
topology: v5e:2x2
jax: 0.10.0
libtpu: 0.0.40
codegen_flags: <defaults>
</compile_context>

<pallas_src>
import functools

import jax
import jax.numpy as jnp
import numpy as np
from jax.experimental import pallas as pl
from jax.experimental.pallas import tpu as pltpu

VOCAB = 12
DIM = 4


def _token_table_kernel(ids_ref, tbl_ref, out_ref):
    """Per row tile: out[r, :] = tbl[ids[r], :] via a one-hot MXU matmul.

    ids_ref : (TILE_N, 1)  int32 token ids
    tbl_ref : (12, 12)     fused per-token output table (resident every step)
    out_ref : (TILE_N, 12) float32 logits
    """
    ids = ids_ref[...]                                               # (TILE_N, 1)
    n = ids.shape[0]
    vocab_iota = jax.lax.broadcasted_iota(jnp.int32, (n, VOCAB), 1)  # (TILE_N, 12)
    onehot = (vocab_iota == ids).astype(jnp.float32)                 # (TILE_N, 12)
    # Out-of-range ids produce an all-zero row (zero output) rather than an error,
    # same behavior as the previous kernel version.
    out_ref[...] = jnp.dot(onehot, tbl_ref[...],
                           preferred_element_type=jnp.float32)       # (TILE_N, 12)


def _fused_vocab_table(params):
    """Run the (pointwise per-token) network once over the 12 embedding rows.

    T[v, :] == forward(token v).  Exact algebraic fusion of
    embedding -> emb_proj -> enc.ff1 -> enc.ff2 -> dec.ff -> tied decoder linear;
    per-row float ops are identical to the reference, so results match exactly.
    """
    E = params["embedding"]                                          # (12, 4)
    h = E @ params["w0"].T + params["b0"]                            # emb_proj
    h = jnp.maximum(h @ params["w1"].T + params["b1"], 0.0)          # encoder.ff1
    h = jnp.maximum(h @ params["w2"].T + params["b2"], 0.0)          # encoder.ff2
    h = jnp.maximum(h @ params["w3"].T + params["b3"], 0.0)          # decoder.ff
    return h @ E.T                                                   # (12, 12) tied weights


def init_params(key):
    """Deterministic parameter init matching the PyTorch module's shapes."""
    ks = jax.random.split(key, 9)
    return {
        # nn.Embedding(12, 4) weight -- also the tied decoder.linear weight.
        "embedding": jax.random.normal(ks[0], (VOCAB, DIM), jnp.float32),
        # emb_proj: Linear(4, 4)
        "w0": jax.random.normal(ks[1], (DIM, DIM), jnp.float32) * 0.5,
        "b0": jax.random.normal(ks[2], (DIM,), jnp.float32) * 0.1,
        # encoder.ff1: Linear(4, 4)
        "w1": jax.random.normal(ks[3], (DIM, DIM), jnp.float32) * 0.5,
        "b1": jax.random.normal(ks[4], (DIM,), jnp.float32) * 0.1,
        # encoder.ff2: Linear(4, 4)
        "w2": jax.random.normal(ks[5], (DIM, DIM), jnp.float32) * 0.5,
        "b2": jax.random.normal(ks[6], (DIM,), jnp.float32) * 0.1,
        # decoder.ff: Linear(4, 4)
        "w3": jax.random.normal(ks[7], (DIM, DIM), jnp.float32) * 0.5,
        "b3": jax.random.normal(ks[8], (DIM,), jnp.float32) * 0.1,
        # NOTE: the registered `buffer` tensors are never used in forward(); omitted.
    }


@functools.partial(jax.jit, static_argnames=("tile_n",))
def encoder_decoder_forward(x_ids, params, tile_n=512):
    """x_ids: (B, S) int32 token ids in [0, VOCAB). Returns (B, S, VOCAB) float32."""
    B, S = x_ids.shape
    n = B * S

    # Fused (12, 12) per-token output table (tiny; fused into the jit by XLA).
    tbl = _fused_vocab_table(params)

    # Row tiling: sublane-aligned tile, 1-D grid over rows.
    # Default TILE_N=512 keeps per-step VMEM ~1 MiB (fits v5e's 16 MiB scoped
    # default and v7x's smaller physical VMEM with huge margin).
    tile_n = max(8, min(int(tile_n), ((n + 7) // 8) * 8))
    tile_n = ((tile_n + 7) // 8) * 8
    n_pad = ((n + tile_n - 1) // tile_n) * tile_n
    grid = (n_pad // tile_n,)

    ids_flat = x_ids.reshape(n, 1).astype(jnp.int32)
    ids_flat = jnp.pad(ids_flat, ((0, n_pad - n), (0, 0)))    # padded rows use id 0, sliced off

    out_flat = pl.pallas_call(
        _token_table_kernel,
        out_shape=jax.ShapeDtypeStruct((n_pad, VOCAB), jnp.float32),
        grid=grid,
        in_specs=[
            pl.BlockSpec((tile_n, 1), lambda i: (i, 0)),       # ids row tile
            pl.BlockSpec((VOCAB, VOCAB), lambda i: (0, 0)),    # fused table, resident
        ],
        out_specs=pl.BlockSpec((tile_n, VOCAB), lambda i: (i, 0)),
        compiler_params=pltpu.CompilerParams(
            dimension_semantics=("parallel",),                  # shard rows across TCs (v7x)
        ),
    )(ids_flat, tbl)

    return out_flat[:n].reshape(B, S, VOCAB)


def reference_forward(x_ids, params):
    """Pure-JAX reference mirroring the PyTorch forward exactly."""
    e = params["embedding"][x_ids]                                    # (B, S, 4)
    h = e @ params["w0"].T + params["b0"]                             # emb_proj
    h = jnp.maximum(h @ params["w1"].T + params["b1"], 0.0)           # encoder.ff1
    h = jnp.maximum(h @ params["w2"].T + params["b2"], 0.0)           # encoder.ff2
    h = jnp.maximum(h @ params["w3"].T + params["b3"], 0.0)           # decoder.ff
    return h @ params["embedding"].T                                  # tied decoder linear


if __name__ == "__main__":
    key = jax.random.PRNGKey(0)
    pkey, xkey, xkey2 = jax.random.split(key, 3)
    params = init_params(pkey)

    # Small shape consistent with the module (token ids, batch=2, seq=8).
    B, S = 2, 8
    x = jax.random.randint(xkey, (B, S), 0, VOCAB, dtype=jnp.int32)
    out = jax.block_until_ready(encoder_decoder_forward(x, params))
    ref = reference_forward(x, params)
    np.testing.assert_allclose(np.asarray(out), np.asarray(ref), rtol=1e-5, atol=1e-5)
    assert out.shape == (B, S, VOCAB) and out.dtype == jnp.float32

    # Larger shape to exercise the multi-step row grid (grid = 4 tiles of 512 rows).
    B2, S2 = 4, 512
    x2 = jax.random.randint(xkey2, (B2, S2), 0, VOCAB, dtype=jnp.int32)
    out2 = jax.block_until_ready(encoder_decoder_forward(x2, params))
    ref2 = reference_forward(x2, params)
    np.testing.assert_allclose(np.asarray(out2), np.asarray(ref2), rtol=1e-5, atol=1e-5)

    print("KERNEL_OK")
</pallas_src>

<mosaic_0001>
module attributes {stable_mosaic.version = 11 : i64} {
  func.func @_token_table_kernel(%arg0: i32, %arg1: memref<16x1xi32, #tpu.memory_space<vmem>>, %arg2: memref<12x12xf32, #tpu.memory_space<vmem>>, %arg3: memref<16x12xf32, #tpu.memory_space<vmem>>) attributes {dimension_semantics = [#tpu.dimension_semantics<parallel>], iteration_bounds = array<i64: 1>, scalar_prefetch = 0 : i64, scratch_operands = 0 : i64, tpu.core_type = #tpu.core_type<tc>, window_params = [{transform_indices = @transform_0, window_bounds = array<i64: 16, 1>}, {pipeline_mode = #tpu.pipeline_mode<synchronous>, transform_indices = @transform_1, window_bounds = array<i64: 12, 12>}, {transform_indices = @transform_2, window_bounds = array<i64: 16, 12>}]} {
    %c0 = arith.constant 0 : index
    %c0_0 = arith.constant 0 : index
    %0 = vector.load %arg1[%c0, %c0_0] : memref<16x1xi32, #tpu.memory_space<vmem>>, vector<16x1xi32>
    %1 = tpu.iota {dimensions = array<i32: 1>} : vector<16x12xi32>
    %2 = vector.broadcast %0 : vector<16x1xi32> to vector<16x12xi32>
    %3 = arith.cmpi eq, %1, %2 : vector<16x12xi32>
    %4 = arith.extui %3 : vector<16x12xi1> to vector<16x12xi32>
    %5 = arith.sitofp %4 : vector<16x12xi32> to vector<16x12xf32>
    %c0_1 = arith.constant 0 : index
    %c0_2 = arith.constant 0 : index
    %6 = vector.load %arg2[%c0_1, %c0_2] : memref<12x12xf32, #tpu.memory_space<vmem>>, vector<12x12xf32>
    %cst = arith.constant dense<0.000000e+00> : vector<16x12xf32>
    %7 = tpu.matmul %5, %6, %cst {dimension_numbers = #tpu.dot_dimension_numbers<[1], [0], [0], [1], [0, 0, 1, 1], [], []>} : vector<16x12xf32>, vector<12x12xf32>, vector<16x12xf32> -> vector<16x12xf32>
    %c0_3 = arith.constant 0 : index
    %c0_4 = arith.constant 0 : index
    %8 = vector.load %arg3[%c0_3, %c0_4] : memref<16x12xf32, #tpu.memory_space<vmem>>, vector<16x12xf32>
    tpu.vector_store %arg3[%c0_3, %c0_4], %7 {strides = array<i32>} : memref<16x12xf32, #tpu.memory_space<vmem>>, vector<16x12xf32>,
    return
  }
  func.func @transform_0(%arg0: i32) -> (i32, i32) {
    %c0_i32 = arith.constant 0 : i32
    %c0_i32_0 = arith.constant 0 : i32
    return %arg0, %c0_i32 : i32, i32
  }
  func.func @transform_1(%arg0: i32) -> (i32, i32) {
    %c0_i32 = arith.constant 0 : i32
    %c0_i32_0 = arith.constant 0 : i32
    %c0_i32_1 = arith.constant 0 : i32
    return %c0_i32, %c0_i32_0 : i32, i32
  }
  func.func @transform_2(%arg0: i32) -> (i32, i32) {
    %c0_i32 = arith.constant 0 : i32
    %c0_i32_0 = arith.constant 0 : i32
    return %arg0, %c0_i32 : i32, i32
  }
}

</mosaic_0001>

<llo_original>
// kernel: encoder_decoder_forward.1
$region0: #{encoder_decoder_forward.1}
  #allocation0 [shape = 'u32[]', space=smem, size = 0x4, offset = 0x4, fixed_abs, tag = 'smem constant byte address 0x4 - core index']
  #allocation1 [shape = 'u32[72,128]{1,0:T(1,128)}', space=vmem, size = 0x9000, scoped, tag = 'internal scratch']
  %s0 = inlined_call_operand.vmem [shape: s32[16,1], index: 0, kind: input, shape index: {}]
  %s1 = inlined_call_operand.vmem [shape: f32[12,12], index: 1, kind: input, shape index: {}]
  %s2 = inlined_call_operand.hbm [shape: f32[16,12], index: 2, kind: output, shape index: {}]
  %s3 = sld [smem:[#allocation0]]
  $region18: #{encoder_decoder_forward.1} parent=0
    _
  %s5 = ssub.s32 1, %s3
  %s6 = scalar_select 0, %s5, %s3
  $region1: #{encoder_decoder_forward.1} parent=0
    #allocation2 [shape = 'u8[8192]{0}', space=vmem, size = 0x2000, scoped, tag = 'output window, operand 0, single buffered']
    #allocation3 [shape = 's32[1]{0}', space=sflag, size = 0x4, scoped, tag = 'scoped memory for encoder_decoder_forward.1']
    %7 = vsyncpa [#allocation3], 0
    // Predicated region
    $region2: #{encoder_decoder_forward.1} parent=1 // pred_check
      _
    $region3: #{encoder_decoder_forward.1} parent=1 // pred_check_branch
      %9 = sbr.rel (0) target = $region5
    $region4: #{encoder_decoder_forward.1} parent=1 // pred_region
      _
    $region5: #{encoder_decoder_forward.1} parent=1 // pred_fallthru
      _
    // Predicated region
    $region6: #{encoder_decoder_forward.1} parent=1 // pred_check
      _
    $region7: #{encoder_decoder_forward.1} parent=1 // pred_check_branch
      %11 = sbr.rel (0) target = $region9
    $region8: #{encoder_decoder_forward.1} parent=1 // pred_region
      _
    $region9: #{encoder_decoder_forward.1} parent=1 // pred_fallthru
      _
    %v12 = vld [vmem:[%s0] sm:$0xff]
    %v13 = vld [vmem:[%s0 + $0x8] sm:$0xff]
    %v14 = vlaneseq
    %v15 = vand.u32 %v14, 127
    %16 = vset.pattern.permute.xlu0 0
    %17 = vperm.xlu0 %16, %v12
    %v18 = vpop.permute.xlu0 %17
    %19 = vset.pattern.permute.xlu0 0
    %20 = vperm.xlu0 %19, %v13
    %v21 = vpop.permute.xlu0 %20
    %vm22 = vcmp.eq.s32.totalorder %v15, %v18
    %vm23 = vcmp.eq.s32.totalorder %v15, %v21
    %v24 = vsel %vm22, 1, 0
    %v25 = vsel %vm23, 1, 0
    %v26 = vcvt.s32.f32 %v24
    %v27 = vcvt.s32.f32 %v25
    %v28 = vld [vmem:[%s1] sm:$0xff]
    %v29 = vld [vmem:[%s1 + $0x8] sm:$0xf]
    %vm30 = vcmask 97280
    %v32 = vsel %vm30, %v26, 0
    %v35 = vsel %vm30, %v27, 0
    %vm37 = vcmask 1043456
    %v39 = vsel %vm37, %v29, 0
    %41 = vmatpush.msra.mxu0 0.0
    %42 = vmatpush.msra.mxu0 0.0
    %43 = vmatpush.msra.mxu0 0.0
    %44 = vmatpush.msra.mxu0 0.0
    %45 = vmatpush.msra.mxu0 0.0
    %46 = vmatpush.msra.mxu0 0.0
    %47 = vmatpush.msra.mxu0 0.0
    %48 = vmatpush.msra.mxu0 0.0
    %49 = vmatpush.msra.mxu0 0.0
    %50 = vmatpush.msra.mxu0 0.0
    %51 = vmatpush.msra.mxu0 0.0
    %52 = vmatpush.msra.mxu0 0.0
    %53 = vmatpush.msra.mxu0 0.0
    %54 = vmatpush.msra.mxu0 0.0
    %55 = vmatpush.msra.mxu0 %v39
    %56 = vmatpush.msra.mxu0 %v28
    %57 = vmatmul.f32.gmra.mxu0 %v32
    %v58 = vpop.f32.mrf.mxu0
    %v59 = vadd.f32 0.0, %v58
    %60 = vmatmul.f32.gmra.mxu0 %v35
    %v61 = vpop.f32.mrf.mxu0
    %v62 = vadd.f32 0.0, %v61
    %63 = vdwg.mxu0
    %64 = vst.msk [vmem:[#allocation2] sm:$0xff] %vm30, %v59
    %65 = vst.msk [vmem:[#allocation2 + $0x8] sm:$0xff] %vm30, %v62
    // Predicated region
    $region10: #{encoder_decoder_forward.1} parent=1 // pred_check
      _
    $region11: #{encoder_decoder_forward.1} parent=1 // pred_check_branch
      %67 = sbr.rel (0) target = $region13
    $region12: #{encoder_decoder_forward.1} parent=1 // pred_region
      %69 = vsyncadd [#allocation3], 0
      %s70 = sshll.u32 [#allocation2], 4
      %s71 = int_to_ptr.vmem [resolvable:$true] %s70
      %s72 = sshll.u32 %s2, 4
      %s73 = int_to_ptr.hbm [resolvable:$true] %s72
      %78 = dma.vmem_to_hbm [thread:$0]  %s71, 256, %s73, [#allocation3], 128, 128, 8
    $region13: #{encoder_decoder_forward.1} parent=1 // pred_fallthru
      _
    // Predicated region
    $region14: #{encoder_decoder_forward.1} parent=1 // pred_check
      _
    $region15: #{encoder_decoder_forward.1} parent=1 // pred_check_branch
      %80 = sbr.rel (0) target = $region17
    $region16: #{encoder_decoder_forward.1} parent=1 // pred_region
      %82 = dma.done [#allocation3], 256
    $region17: #{encoder_decoder_forward.1} parent=1 // pred_fallthru
      _
    %83 = vsyncpa [#allocation3], 1

</llo_original>
